<compile_context>
chip_gen: v6e
topology: v6e:2x2x1
jax: 0.10.0
libtpu: 0.0.40
codegen_flags: <defaults>
</compile_context>

<pallas_src>
import functools

import jax
import jax.numpy as jnp
from jax.experimental import pallas as pl
from jax.experimental.pallas import tpu as pltpu

HIDDEN_1_SIZE = 64
HIDDEN_2_SIZE = 64
HIDDEN_3_SIZE = 32
LANE = 128  # fused tower width (= 2 * HIDDEN_1_SIZE = 2 * HIDDEN_2_SIZE)


def _round_up(x, m):
    return ((x + m - 1) // m) * m


# ----------------------------------------------------------------------------
# Pallas kernel: fused forward pass for one batch tile.
#   x_ref   : (TB, num_inputs)            f32
#   w1_ref  : (num_inputs, 128)           f32   [actor_w1 | critic_w1]
#   w23_ref : (2, 128, 128)               f32   block-diag layer-2 / layer-3
#   b_ref   : (4, 128)                    f32   rows: b1, b2, b3, head
#             head row: lanes [H3, 2*H3) = critic_linear weight, lane 2*H3 = bias
#   out_ref : (TB, 128)                   f32   lanes [0,H3)=actor, lane H3=value
# ----------------------------------------------------------------------------
def _mlp_fused_kernel(x_ref, w1_ref, w23_ref, b_ref, out_ref, *, continuous: bool):
    x = x_ref[...].astype(jnp.float32)

    if continuous:
        act = jnp.tanh
    else:
        # LeakyReLU, PyTorch default negative_slope = 0.01
        act = lambda h: jnp.where(h > 0, h, 0.01 * h)

    b1 = b_ref[0:1, :]      # (1, 128) lane-major bias rows (clean row broadcast)
    b2 = b_ref[1:2, :]
    b3 = b_ref[2:3, :]
    head = b_ref[3:4, :]    # critic_linear weight (lanes [H3,2H3)) + bias (lane 2H3)

    h = act(jnp.dot(x, w1_ref[...], preferred_element_type=jnp.float32) + b1)
    h = act(jnp.dot(h, w23_ref[0], preferred_element_type=jnp.float32) + b2)
    h = act(jnp.dot(h, w23_ref[1], preferred_element_type=jnp.float32) + b3)
    # h: (TB, 128) with lanes [0,H3)=actor hidden, [H3,2H3)=critic hidden, rest 0

    # Critic head as VPU multiply + lane reduction (no width-1 MXU matmul).
    # Lanes outside [H3, 2H3) of h are exactly zero, so parking clb in lane 2H3
    # of the head row does not pollute the reduction.
    clb = head[:, 2 * HIDDEN_3_SIZE: 2 * HIDDEN_3_SIZE + 1]          # (1, 1)
    value = jnp.sum(h * head, axis=-1, keepdims=True) + clb          # (TB, 1)

    # One lane-dense output slab: lanes [0,H3) = actor hidden, lane H3 = value.
    lane_idx = jax.lax.broadcasted_iota(jnp.int32, h.shape, 1)
    out = jnp.where(lane_idx < HIDDEN_3_SIZE, h,
                    jnp.where(lane_idx == HIDDEN_3_SIZE, value, 0.0))
    out_ref[...] = out.astype(out_ref.dtype)


# ----------------------------------------------------------------------------
# Wrapper: batch-tiled pallas_call with resident weights.
# ----------------------------------------------------------------------------
def mlp_base_forward(x, packed_params, *, continuous: bool, block_b: int = 256):
    """packed_params = (w1 [n_in,128], w23 [2,128,128], bias [4,128])."""
    w1, w23, bias = packed_params
    b, n_in = x.shape

    tb = _round_up(min(block_b, _round_up(b, 8)), 8)
    pad_b = _round_up(b, tb)
    if pad_b != b:
        x = jnp.pad(x, ((0, pad_b - b), (0, 0)))

    kernel = functools.partial(_mlp_fused_kernel, continuous=continuous)
    out = pl.pallas_call(
        kernel,
        out_shape=jax.ShapeDtypeStruct((pad_b, LANE), jnp.float32),
        grid=(pad_b // tb,),
        in_specs=[
            pl.BlockSpec((tb, n_in), lambda i: (i, 0)),       # streamed batch tile
            pl.BlockSpec(w1.shape, lambda i: (0, 0)),          # resident weights
            pl.BlockSpec(w23.shape, lambda i: (0, 0, 0)),
            pl.BlockSpec(bias.shape, lambda i: (0, 0)),
        ],
        out_specs=pl.BlockSpec((tb, LANE), lambda i: (i, 0)),
        compiler_params=pltpu.CompilerParams(
            dimension_semantics=("parallel",)),
    )(x, w1, w23, bias)

    out = out[:b]
    value = out[:, HIDDEN_3_SIZE:HIDDEN_3_SIZE + 1]
    hidden_actor = out[:, :HIDDEN_3_SIZE]
    return value, hidden_actor


# ----------------------------------------------------------------------------
# Deterministic parameter init mirroring util_init: orthogonal weights with
# gain sqrt(2), zero biases (stored in y = x @ W layout).
# ----------------------------------------------------------------------------
def _orthogonal(key, fan_in, fan_out, gain):
    rows, cols = max(fan_in, fan_out), min(fan_in, fan_out)
    a = jax.random.normal(key, (rows, cols), dtype=jnp.float32)
    q, r = jnp.linalg.qr(a)
    d = jnp.diagonal(r)
    q = q * jnp.where(d >= 0, 1.0, -1.0)[None, :]   # sign-correct (robust to d == 0)
    w = q if fan_in >= fan_out else q.T
    return gain * w.reshape(fan_in, fan_out)


def init_params(key, num_inputs):
    gain = jnp.sqrt(2.0)
    dims = [num_inputs, HIDDEN_1_SIZE, HIDDEN_2_SIZE, HIDDEN_3_SIZE]
    keys = jax.random.split(key, 7)
    params = []
    # actor tower
    for i in range(3):
        params += [_orthogonal(keys[i], dims[i], dims[i + 1], gain),
                   jnp.zeros((dims[i + 1],), jnp.float32)]
    # critic tower
    for i in range(3):
        params += [_orthogonal(keys[3 + i], dims[i], dims[i + 1], gain),
                   jnp.zeros((dims[i + 1],), jnp.float32)]
    # critic_linear head
    params += [_orthogonal(keys[6], HIDDEN_3_SIZE, 1, gain),
               jnp.zeros((1,), jnp.float32)]
    return tuple(params)


def pack_params(params):
    """Pack the 14 per-layer tensors into 3 contiguous kernel inputs."""
    (aw1, ab1, aw2, ab2, aw3, ab3,
     cw1, cb1, cw2, cb2, cw3, cb3, clw, clb) = params
    h1, h2, h3 = HIDDEN_1_SIZE, HIDDEN_2_SIZE, HIDDEN_3_SIZE
    assert 2 * h1 == LANE and 2 * h2 == LANE and 2 * h3 <= LANE

    # layer 1: [num_inputs, 128] = [actor | critic]
    w1 = jnp.concatenate([aw1, cw1], axis=1)

    # layer 2: block-diagonal [128, 128]
    w2 = jnp.zeros((LANE, LANE), jnp.float32)
    w2 = w2.at[:h1, :h2].set(aw2).at[h1:, h2:].set(cw2)

    # layer 3: block-diagonal, output padded to 128 lanes
    w3 = jnp.zeros((LANE, LANE), jnp.float32)
    w3 = w3.at[:h2, :h3].set(aw3).at[h2:, h3:2 * h3].set(cw3)

    w23 = jnp.stack([w2, w3])                         # (2, 128, 128)

    b1 = jnp.concatenate([ab1, cb1])                  # (128,)
    b2 = jnp.concatenate([ab2, cb2])                  # (128,)
    b3 = jnp.zeros((LANE,), jnp.float32).at[:h3].set(ab3).at[h3:2 * h3].set(cb3)
    head = (jnp.zeros((LANE,), jnp.float32)
            .at[h3:2 * h3].set(clw[:, 0])             # critic_linear weight
            .at[2 * h3].set(clb[0]))                  # critic_linear bias
    bias = jnp.stack([b1, b2, b3, head])              # (4, 128)
    return w1, w23, bias


def reference_forward(x, params, *, continuous: bool):
    (aw1, ab1, aw2, ab2, aw3, ab3,
     cw1, cb1, cw2, cb2, cw3, cb3, clw, clb) = params
    act = jnp.tanh if continuous else (lambda h: jnp.where(h > 0, h, 0.01 * h))
    hc = act(x @ cw1 + cb1); hc = act(hc @ cw2 + cb2); hc = act(hc @ cw3 + cb3)
    ha = act(x @ aw1 + ab1); ha = act(ha @ aw2 + ab2); ha = act(ha @ aw3 + ab3)
    return hc @ clw + clb, ha


if __name__ == "__main__":
    num_inputs = 16
    batch = 20   # not a multiple of the batch tile -> exercises padding + 3-step grid

    key = jax.random.PRNGKey(0)
    k_param, k_x = jax.random.split(key)
    params = init_params(k_param, num_inputs)
    packed = pack_params(params)
    x = jax.random.normal(k_x, (batch, num_inputs), dtype=jnp.float32)

    for continuous in (False, True):   # LeakyReLU path and Tanh path
        value, hidden_actor = mlp_base_forward(
            x, packed, continuous=continuous, block_b=8)
        jax.block_until_ready((value, hidden_actor))

        v_ref, a_ref = reference_forward(x, params, continuous=continuous)
        assert value.shape == (batch, 1)
        assert hidden_actor.shape == (batch, HIDDEN_3_SIZE)
        assert jnp.allclose(value, v_ref, atol=1e-4, rtol=1e-4)
        assert jnp.allclose(hidden_actor, a_ref, atol=1e-4, rtol=1e-4)

    print("KERNEL_OK")
</pallas_src>

<mosaic_0001>
module attributes {stable_mosaic.version = 11 : i64} {
  func.func @_mlp_fused_kernel(%arg0: i32, %arg1: memref<8x16xf32, #tpu.memory_space<vmem>>, %arg2: memref<16x128xf32, #tpu.memory_space<vmem>>, %arg3: memref<2x128x128xf32, #tpu.memory_space<vmem>>, %arg4: memref<4x128xf32, #tpu.memory_space<vmem>>, %arg5: memref<8x128xf32, #tpu.memory_space<vmem>>) attributes {dimension_semantics = [#tpu.dimension_semantics<parallel>], iteration_bounds = array<i64: 3>, scalar_prefetch = 0 : i64, scratch_operands = 0 : i64, tpu.core_type = #tpu.core_type<tc>, window_params = [{transform_indices = @transform_0, window_bounds = array<i64: 8, 16>}, {pipeline_mode = #tpu.pipeline_mode<synchronous>, transform_indices = @transform_1, window_bounds = array<i64: 16, 128>}, {pipeline_mode = #tpu.pipeline_mode<synchronous>, transform_indices = @transform_2, window_bounds = array<i64: 2, 128, 128>}, {pipeline_mode = #tpu.pipeline_mode<synchronous>, transform_indices = @transform_3, window_bounds = array<i64: 4, 128>}, {transform_indices = @transform_4, window_bounds = array<i64: 8, 128>}]} {
    %c0 = arith.constant 0 : index
    %c0_0 = arith.constant 0 : index
    %0 = vector.load %arg1[%c0, %c0_0] : memref<8x16xf32, #tpu.memory_space<vmem>>, vector<8x16xf32>
    %c0_1 = arith.constant 0 : index
    %c0_2 = arith.constant 0 : index
    %1 = vector.load %arg4[%c0_1, %c0_2] : memref<4x128xf32, #tpu.memory_space<vmem>>, vector<1x128xf32>
    %c1 = arith.constant 1 : index
    %c0_3 = arith.constant 0 : index
    %2 = vector.load %arg4[%c1, %c0_3] : memref<4x128xf32, #tpu.memory_space<vmem>>, vector<1x128xf32>
    %c2 = arith.constant 2 : index
    %c0_4 = arith.constant 0 : index
    %3 = vector.load %arg4[%c2, %c0_4] : memref<4x128xf32, #tpu.memory_space<vmem>>, vector<1x128xf32>
    %c3 = arith.constant 3 : index
    %c0_5 = arith.constant 0 : index
    %4 = vector.load %arg4[%c3, %c0_5] : memref<4x128xf32, #tpu.memory_space<vmem>>, vector<1x128xf32>
    %c0_6 = arith.constant 0 : index
    %c0_7 = arith.constant 0 : index
    %5 = vector.load %arg2[%c0_6, %c0_7] : memref<16x128xf32, #tpu.memory_space<vmem>>, vector<16x128xf32>
    %cst = arith.constant dense<0.000000e+00> : vector<8x128xf32>
    %6 = tpu.matmul %0, %5, %cst {dimension_numbers = #tpu.dot_dimension_numbers<[1], [0], [0], [1], [0, 0, 1, 1], [], []>} : vector<8x16xf32>, vector<16x128xf32>, vector<8x128xf32> -> vector<8x128xf32>
    %7 = vector.broadcast %1 : vector<1x128xf32> to vector<8x128xf32>
    %8 = arith.addf %6, %7 : vector<8x128xf32>
    %cst_8 = arith.constant 0.000000e+00 : f32
    %9 = vector.broadcast %cst_8 : f32 to vector<8x128xf32>
    %10 = arith.cmpf ogt, %8, %9 : vector<8x128xf32>
    %cst_9 = arith.constant 0.00999999977 : f32
    %11 = vector.broadcast %cst_9 : f32 to vector<8x128xf32>
    %12 = arith.mulf %11, %8 : vector<8x128xf32>
    %13 = arith.select %10, %8, %12 : vector<8x128xi1>, vector<8x128xf32>
    %c0_10 = arith.constant 0 : index
    %c0_11 = arith.constant 0 : index
    %c0_12 = arith.constant 0 : index
    %14 = vector.load %arg3[%c0_10, %c0_11, %c0_12] : memref<2x128x128xf32, #tpu.memory_space<vmem>>, vector<1x128x128xf32>
    %15 = vector.shape_cast %14 : vector<1x128x128xf32> to vector<128x128xf32>
    %cst_13 = arith.constant dense<0.000000e+00> : vector<8x128xf32>
    %16 = tpu.matmul %13, %15, %cst_13 {dimension_numbers = #tpu.dot_dimension_numbers<[1], [0], [0], [1], [0, 0, 1, 1], [], []>} : vector<8x128xf32>, vector<128x128xf32>, vector<8x128xf32> -> vector<8x128xf32>
    %17 = vector.broadcast %2 : vector<1x128xf32> to vector<8x128xf32>
    %18 = arith.addf %16, %17 : vector<8x128xf32>
    %cst_14 = arith.constant 0.000000e+00 : f32
    %19 = vector.broadcast %cst_14 : f32 to vector<8x128xf32>
    %20 = arith.cmpf ogt, %18, %19 : vector<8x128xf32>
    %cst_15 = arith.constant 0.00999999977 : f32
    %21 = vector.broadcast %cst_15 : f32 to vector<8x128xf32>
    %22 = arith.mulf %21, %18 : vector<8x128xf32>
    %23 = arith.select %20, %18, %22 : vector<8x128xi1>, vector<8x128xf32>
    %c1_16 = arith.constant 1 : index
    %c0_17 = arith.constant 0 : index
    %c0_18 = arith.constant 0 : index
    %24 = vector.load %arg3[%c1_16, %c0_17, %c0_18] : memref<2x128x128xf32, #tpu.memory_space<vmem>>, vector<1x128x128xf32>
    %25 = vector.shape_cast %24 : vector<1x128x128xf32> to vector<128x128xf32>
    %cst_19 = arith.constant dense<0.000000e+00> : vector<8x128xf32>
    %26 = tpu.matmul %23, %25, %cst_19 {dimension_numbers = #tpu.dot_dimension_numbers<[1], [0], [0], [1], [0, 0, 1, 1], [], []>} : vector<8x128xf32>, vector<128x128xf32>, vector<8x128xf32> -> vector<8x128xf32>
    %27 = vector.broadcast %3 : vector<1x128xf32> to vector<8x128xf32>
    %28 = arith.addf %26, %27 : vector<8x128xf32>
    %cst_20 = arith.constant 0.000000e+00 : f32
    %29 = vector.broadcast %cst_20 : f32 to vector<8x128xf32>
    %30 = arith.cmpf ogt, %28, %29 : vector<8x128xf32>
    %cst_21 = arith.constant 0.00999999977 : f32
    %31 = vector.broadcast %cst_21 : f32 to vector<8x128xf32>
    %32 = arith.mulf %31, %28 : vector<8x128xf32>
    %33 = arith.select %30, %28, %32 : vector<8x128xi1>, vector<8x128xf32>
    %34 = vector.extract_strided_slice %4 {offsets = [0, 64], sizes = [1, 1], strides = [1, 1]} : vector<1x128xf32> to vector<1x1xf32>
    %35 = vector.broadcast %4 : vector<1x128xf32> to vector<8x128xf32>
    %36 = arith.mulf %33, %35 : vector<8x128xf32>
    %cst_22 = arith.constant dense<0.000000e+00> : vector<8xf32>
    %37 = vector.multi_reduction <add>, %36, %cst_22 [1] : vector<8x128xf32> to vector<8xf32>
    %38 = vector.shape_cast %37 : vector<8xf32> to vector<8x1xf32>
    %39 = vector.broadcast %34 : vector<1x1xf32> to vector<8x1xf32>
    %40 = arith.addf %38, %39 : vector<8x1xf32>
    %41 = tpu.iota {dimensions = array<i32: 1>} : vector<8x128xi32>
    %c32_i32 = arith.constant 32 : i32
    %42 = vector.broadcast %c32_i32 : i32 to vector<8x128xi32>
    %43 = arith.cmpi slt, %41, %42 : vector<8x128xi32>
    %c32_i32_23 = arith.constant 32 : i32
    %44 = vector.broadcast %c32_i32_23 : i32 to vector<8x128xi32>
    %45 = arith.cmpi eq, %41, %44 : vector<8x128xi32>
    %cst_24 = arith.constant 0.000000e+00 : f32
    %46 = vector.shape_cast %40 : vector<8x1xf32> to vector<8x1xf32>
    %47 = vector.broadcast %46 : vector<8x1xf32> to vector<8x128xf32>
    %48 = vector.broadcast %cst_24 : f32 to vector<8x128xf32>
    %49 = arith.select %45, %47, %48 : vector<8x128xi1>, vector<8x128xf32>
    %50 = arith.select %43, %33, %49 : vector<8x128xi1>, vector<8x128xf32>
    %c0_25 = arith.constant 0 : index
    %c0_26 = arith.constant 0 : index
    %51 = vector.load %arg5[%c0_25, %c0_26] : memref<8x128xf32, #tpu.memory_space<vmem>>, vector<8x128xf32>
    tpu.vector_store %arg5[%c0_25, %c0_26], %50 {strides = array<i32>} : memref<8x128xf32, #tpu.memory_space<vmem>>, vector<8x128xf32>,
    return
  }
  func.func @transform_0(%arg0: i32) -> (i32, i32) {
    %c0_i32 = arith.constant 0 : i32
    %c0_i32_0 = arith.constant 0 : i32
    return %arg0, %c0_i32 : i32, i32
  }
  func.func @transform_1(%arg0: i32) -> (i32, i32) {
    %c0_i32 = arith.constant 0 : i32
    %c0_i32_0 = arith.constant 0 : i32
    %c0_i32_1 = arith.constant 0 : i32
    return %c0_i32, %c0_i32_0 : i32, i32
  }
  func.func @transform_2(%arg0: i32) -> (i32, i32, i32) {
    %c0_i32 = arith.constant 0 : i32
    %c0_i32_0 = arith.constant 0 : i32
    %c0_i32_1 = arith.constant 0 : i32
    %c0_i32_2 = arith.constant 0 : i32
    return %c0_i32, %c0_i32_0, %c0_i32_1 : i32, i32, i32
  }
  func.func @transform_3(%arg0: i32) -> (i32, i32) {
    %c0_i32 = arith.constant 0 : i32
    %c0_i32_0 = arith.constant 0 : i32
    %c0_i32_1 = arith.constant 0 : i32
    return %c0_i32, %c0_i32_0 : i32, i32
  }
  func.func @transform_4(%arg0: i32) -> (i32, i32) {
    %c0_i32 = arith.constant 0 : i32
    %c0_i32_0 = arith.constant 0 : i32
    return %arg0, %c0_i32 : i32, i32
  }
}

</mosaic_0001>

<llo_original>
// kernel: tpu_custom_call.1
$region0: #{tpu_custom_call.1}
  #allocation0 [shape = 'u32[]', space=smem, size = 0x4, offset = 0x4, fixed_abs, tag = 'smem constant byte address 0x4 - core index']
  #allocation1 [shape = 'u32[144,128]{1,0:T(1,128)}', space=vmem, size = 0x12000, scoped, tag = 'internal scratch']
  %s0 = inlined_call_operand.vmem [shape: f32[24,16], index: 0, kind: input, shape index: {}]
  %s1 = inlined_call_operand.vmem [shape: f32[16,128], index: 1, kind: input, shape index: {}]
  %s2 = inlined_call_operand.hbm [shape: f32[2,128,128], index: 2, kind: input, shape index: {}]
  %s3 = inlined_call_operand.vmem [shape: f32[4,128], index: 3, kind: input, shape index: {}]
  %s4 = inlined_call_operand.hbm [shape: f32[24,128], index: 4, kind: output, shape index: {}]
  %s5 = sld [smem:[#allocation0]]
  $region53: #{tpu_custom_call.1} parent=0
    _
  %s7 = ssub.s32 1, %s5
  %s8 = scalar_select 0, %s7, %s5
  $region1: #{tpu_custom_call.1} parent=0
    #allocation2 [shape = 'u8[131072]{0}', space=vmem, size = 0x20000, scoped, tag = 'input window, operand 2, single buffered']
    #allocation3 [shape = 's32[2]{0}', space=sflag, size = 0x8, scoped, tag = 'scoped memory for tpu_custom_call.1']
    #allocation4 [shape = 's32[2]{0}', space=sflag, size = 0x8, scoped, tag = 'scoped memory for tpu_custom_call.1']
    #allocation5 [shape = 'u8[8192]{0}', space=vmem, size = 0x2000, scoped, tag = 'output window, operand 0']
    %9 = vsyncpa [#allocation3], 0
    %10 = vsyncpa [#allocation4], 0
    %s11 = scalar_lea.sflag [#allocation4], 1
    %12 = vsyncpa %s11, 0
    loop: start=0, step=1, limit=5
    $region2: #{tpu_custom_call.1} parent=1 // loop_pre_header
      _
    $region3: #{tpu_custom_call.1} parent=1 // loop_header
      %s14 = sphi 0, %s18
      %p15 = scmp.ge.s32.totalorder %s14, 5
      %s24 = sphi 0, %s26
      %s27 = sphi 0, %s24
      %s28 = sphi 0, %s27
      %s44 = sphi 0, %s28
      %s48 = sphi 0, %s48
      %s50 = sphi 0, %s48
      %s51 = sphi 0, %s50
      %s65 = sphi 0, %s51
      %s69 = sphi 0, %s69
      %s71 = sphi 0, %s69
      %s72 = sphi 0, %s71
      %s86 = sphi 0, %s72
      %s90 = sphi 0, %s90
      %s92 = sphi 0, %s90
      %s93 = sphi 0, %s92
      %s107 = sphi 0, %s93
      %s113 = sphi 0, %s115
      %s116 = sphi 0, %s113
      %s117 = sphi 0, %s116
      %s133 = sphi 0, %s117
    $region4: #{tpu_custom_call.1} parent=1 // loop_header_branch
      %17 = sbr.rel (%p15) target = $region8
    $region5: #{tpu_custom_call.1} parent=1 // loop_body
      %s19 = ssub.s32 %s14, 1
      %s20 = ssub.s32 %s14, 2
      %s21 = sadd.s32 %s14, 1
      %s22 = ssub.s32 %s14, %s21
      %p23 = scmp.eq.s32.totalorder %s22, 0
      %s25 = sadd.s32 %s24, 1
      %s26 = scalar_select %p23, %s24, %s25
      %p29 = pneg %p23
      %p30 = scmp.eq.s32.totalorder %s14, 2
      %p31 = por %p29, %p30
      %p32 = scmp.ne.s32.totalorder %s24, %s27
      %p33 = scmp.eq.s32.totalorder %s14, 0
      %p34 = por %p32, %p33
      %p35 = scmp.ne.s32.totalorder %s24, %s27
      %p36 = scmp.eq.s32.totalorder %s19, 2
      %p37 = por %p35, %p36
      %p38 = scmp.ne.s32.totalorder %s27, %s28
      %p39 = scmp.eq.s32.totalorder %s19, 0
      %p40 = por %p38, %p39
      %p41 = scmp.ne.s32.totalorder %s27, %s28
      %p42 = scmp.eq.s32.totalorder %s20, 2
      %p43 = por %p41, %p42
      %p45 = scmp.ne.s32.totalorder %s28, %s44
      %p46 = scmp.eq.s32.totalorder %s20, 0
      %p47 = por %p45, %p46
      %s49 = sadd.s32 %s48, 1
      %p52 = scmp.eq.s32.totalorder %s14, 2
      %p53 = scmp.ne.s32.totalorder %s48, %s50
      %p54 = scmp.eq.s32.totalorder %s14, 0
      %p55 = por %p53, %p54
      %p56 = scmp.ne.s32.totalorder %s48, %s50
      %p57 = scmp.eq.s32.totalorder %s19, 2
      %p58 = por %p56, %p57
      %p59 = scmp.ne.s32.totalorder %s50, %s51
      %p60 = scmp.eq.s32.totalorder %s19, 0
      %p61 = por %p59, %p60
      %p62 = scmp.ne.s32.totalorder %s50, %s51
      %p63 = scmp.eq.s32.totalorder %s20, 2
      %p64 = por %p62, %p63
      %p66 = scmp.ne.s32.totalorder %s51, %s65
      %p67 = scmp.eq.s32.totalorder %s20, 0
      %p68 = por %p66, %p67
      %s70 = sadd.s32 %s69, 1
      %p73 = scmp.eq.s32.totalorder %s14, 2
      %p74 = scmp.ne.s32.totalorder %s69, %s71
      %p75 = scmp.eq.s32.totalorder %s14, 0
      %p76 = por %p74, %p75
      %p77 = scmp.ne.s32.totalorder %s69, %s71
      %p78 = scmp.eq.s32.totalorder %s19, 2
      %p79 = por %p77, %p78
      %p80 = scmp.ne.s32.totalorder %s71, %s72
      %p81 = scmp.eq.s32.totalorder %s19, 0
      %p82 = por %p80, %p81
      %p83 = scmp.ne.s32.totalorder %s71, %s72
      %p84 = scmp.eq.s32.totalorder %s20, 2
      %p85 = por %p83, %p84
      %p87 = scmp.ne.s32.totalorder %s72, %s86
      %p88 = scmp.eq.s32.totalorder %s20, 0
      %p89 = por %p87, %p88
      %s91 = sadd.s32 %s90, 1
      %p94 = scmp.eq.s32.totalorder %s14, 2
      %p95 = scmp.ne.s32.totalorder %s90, %s92
      %p96 = scmp.eq.s32.totalorder %s14, 0
      %p97 = por %p95, %p96
      %p98 = scmp.ne.s32.totalorder %s90, %s92
      %p99 = scmp.eq.s32.totalorder %s19, 2
      %p100 = por %p98, %p99
      %p101 = scmp.ne.s32.totalorder %s92, %s93
      %p102 = scmp.eq.s32.totalorder %s19, 0
      %p103 = por %p101, %p102
      %p104 = scmp.ne.s32.totalorder %s92, %s93
      %p105 = scmp.eq.s32.totalorder %s20, 2
      %p106 = por %p104, %p105
      %p108 = scmp.ne.s32.totalorder %s93, %s107
      %p109 = scmp.eq.s32.totalorder %s20, 0
      %p110 = por %p108, %p109
      %s111 = ssub.s32 %s14, %s21
      %p112 = scmp.eq.s32.totalorder %s111, 0
      %s114 = sadd.s32 %s113, 1
      %s115 = scalar_select %p112, %s113, %s114
      %p118 = pneg %p112
      %p119 = scmp.eq.s32.totalorder %s14, 2
      %p120 = por %p118, %p119
      %p121 = scmp.ne.s32.totalorder %s113, %s116
      %p122 = scmp.eq.s32.totalorder %s14, 0
      %p123 = por %p121, %p122
      %p124 = scmp.ne.s32.totalorder %s113, %s116
      %p125 = scmp.eq.s32.totalorder %s19, 2
      %p126 = por %p124, %p125
      %p127 = scmp.ne.s32.totalorder %s116, %s117
      %p128 = scmp.eq.s32.totalorder %s19, 0
      %p129 = por %p127, %p128
      %p130 = scmp.ne.s32.totalorder %s116, %s117
      %p131 = scmp.eq.s32.totalorder %s20, 2
      %p132 = por %p130, %p131
      %p134 = scmp.ne.s32.totalorder %s117, %s133
      %p135 = scmp.eq.s32.totalorder %s20, 0
      %p136 = por %p134, %p135
      %p137 = scmp.le.s32.totalorder 1, %s14
      %p138 = scmp.lt.s32.totalorder %s14, 4
      %p139 = pnand %p137, %p138
      %p140 = pneg %p139
      // Predicated region
      $region9: #{tpu_custom_call.1} parent=5 // pred_check
        _
      $region10: #{tpu_custom_call.1} parent=5 // pred_check_branch
        %142 = sbr.rel (%p139) target = $region12
      $region11: #{tpu_custom_call.1} parent=5 // pred_region
        %s143 = ssub.s32 %s14, 1
        // Predicated region
        $region13: #{tpu_custom_call.1} parent=11 // pred_check
          %p144 = pneg %p61
        $region14: #{tpu_custom_call.1} parent=11 // pred_check_branch
          %146 = sbr.rel (%p144) target = $region16
        $region15: #{tpu_custom_call.1} parent=11 // pred_region
          _
        $region16: #{tpu_custom_call.1} parent=11 // pred_fallthru
          _
        // Predicated region
        $region17: #{tpu_custom_call.1} parent=11 // pred_check
          %p147 = pneg %p82
        $region18: #{tpu_custom_call.1} parent=11 // pred_check_branch
          %149 = sbr.rel (%p147) target = $region20
        $region19: #{tpu_custom_call.1} parent=11 // pred_region
          %s151 = ssub.s32 4096, 4096
          %152 = vsyncadd [#allocation3], %s151
          %s153 = sshll.u32 [#allocation2], 4
          %s154 = int_to_ptr.vmem [resolvable:$true] %s153
          %159 = dma.hbm_to_vmem [thread:$0]  %s2, 4096, %s154, [#allocation3], 128, 128, 8
        $region20: #{tpu_custom_call.1} parent=11 // pred_fallthru
          _
        // Predicated region
        $region21: #{tpu_custom_call.1} parent=11 // pred_check
          %p160 = pneg %p103
        $region22: #{tpu_custom_call.1} parent=11 // pred_check_branch
          %162 = sbr.rel (%p160) target = $region24
        $region23: #{tpu_custom_call.1} parent=11 // pred_region
          _
        $region24: #{tpu_custom_call.1} parent=11 // pred_fallthru
          _
      $region12: #{tpu_custom_call.1} parent=5 // pred_fallthru
        _
      %p163 = scmp.lt.s32.totalorder %s14, 3
      // Predicated region
      $region25: #{tpu_custom_call.1} parent=5 // pred_check
        %p164 = pneg %p163
      $region26: #{tpu_custom_call.1} parent=5 // pred_check_branch
        %166 = sbr.rel (%p164) target = $region28
      $region27: #{tpu_custom_call.1} parent=5 // pred_region
        // Predicated region
        $region29: #{tpu_custom_call.1} parent=27 // pred_check
          %p167 = pneg %p34
        $region30: #{tpu_custom_call.1} parent=27 // pred_check_branch
          %169 = sbr.rel (%p167) target = $region32
        $region31: #{tpu_custom_call.1} parent=27 // pred_region
          %p170 = scmp.lt.s32.totalorder %s14, 2
          %s171 = scalar_select %p170, %s14, 2
          %s172 = smul.addr %s171, 8
          %s173 = scalar_lea.vmem %s0, %s172
        $region32: #{tpu_custom_call.1} parent=27 // pred_fallthru
          _
      $region28: #{tpu_custom_call.1} parent=5 // pred_fallthru
        _
      %p174 = scmp.le.s32.totalorder 1, %s14
      %p175 = scmp.lt.s32.totalorder %s14, 4
      %p176 = pnand %p174, %p175
      %p177 = pneg %p176
      // Predicated region
      $region33: #{tpu_custom_call.1} parent=5 // pred_check
        _
      $region34: #{tpu_custom_call.1} parent=5 // pred_check_branch
        %179 = sbr.rel (%p176) target = $region36
      $region35: #{tpu_custom_call.1} parent=5 // pred_region
        %s180 = ssub.s32 %s14, 1
        // Predicated region
        $region37: #{tpu_custom_call.1} parent=35 // pred_check
          %p181 = pneg %p82
        $region38: #{tpu_custom_call.1} parent=35 // pred_check_branch
          %183 = sbr.rel (%p181) target = $region40
        $region39: #{tpu_custom_call.1} parent=35 // pred_region
          %184 = dma.done [#allocation3], 4096
        $region40: #{tpu_custom_call.1} parent=35 // pred_fallthru
          _
        %p185 = scmp.lt.s32.totalorder %s19, 2
        %s186 = scalar_select %p185, %s19, 2
        %s187 = smul.addr %s186, 8
        %s188 = scalar_lea.vmem %s0, %s187
        %p189 = pneg %p40
        %p190 = pneg %p37
        %p191 = pneg %p61
        %p192 = pneg %p58
        %p193 = pneg %p82
        %p194 = pneg %p79
        %p195 = pneg %p103
        %p196 = pneg %p100
        %p197 = pneg %p129
        %p198 = pneg %p126
        %s199 = sand.u32 %s116, 1
        %s200 = scalar_lea.sflag [#allocation4], %s199
        %s201 = sand.u32 %s116, 1
        %s202 = smul.addr %s201, 8
        %s203 = scalar_lea.vmem [#allocation5], %s202
        %p204 = scmp.lt.s32.totalorder %s19, 2
        %s205 = scalar_select %p204, %s19, 2
        %s206 = smul.addr %s205, 8
        %s207 = scalar_lea.vmem %s0, %s206
        %v208 = vld [vmem:[%s207] sm:$0xff]
        %v209 = vld [vmem:[%s3] sm:$0x1]
        %v210 = vld [vmem:[%s3 + $0x1] sm:$0x1]
        %v211 = vld [vmem:[%s3 + $0x2] sm:$0x1]
        %v212 = vld [vmem:[%s3 + $0x3] sm:$0x1]
        %v213 = vld [vmem:[%s1] sm:$0xff]
        %v214 = vld [vmem:[%s1 + $0x8] sm:$0xff]
        %v215 = vlaneseq
        %v216 = vshrl.u32 %v215, 7
        %v217 = vsub.s32 0, %v216
        %v218 = vrot.slane %v209, %v217
        %vm219 = vcmask 130048
        %v221 = vsel %vm219, %v208, 0
        %223 = vmatprep.subr.mxu0 0.0
        %224 = vmatpush1.msra.mxu0 0.0
        %225 = vmatprep.subr.mxu0 0.0
        %226 = vmatpush1.msra.mxu0 0.0
        %227 = vmatprep.subr.mxu0 0.0
        %228 = vmatpush1.msra.mxu0 0.0
        %229 = vmatprep.subr.mxu0 0.0
        %230 = vmatpush1.msra.mxu0 0.0
        %231 = vmatprep.subr.mxu0 0.0
        %232 = vmatpush1.msra.mxu0 0.0
        %233 = vmatprep.subr.mxu0 0.0
        %234 = vmatpush1.msra.mxu0 0.0
        %235 = vmatprep.subr.mxu0 0.0
        %236 = vmatpush1.msra.mxu0 0.0
        %237 = vmatprep.subr.mxu0 0.0
        %238 = vmatpush1.msra.mxu0 0.0
        %239 = vmatprep.subr.mxu0 0.0
        %240 = vmatpush1.msra.mxu0 0.0
        %241 = vmatprep.subr.mxu0 0.0
        %242 = vmatpush1.msra.mxu0 0.0
        %243 = vmatprep.subr.mxu0 0.0
        %244 = vmatpush1.msra.mxu0 0.0
        %245 = vmatprep.subr.mxu0 0.0
        %246 = vmatpush1.msra.mxu0 0.0
        %247 = vmatprep.subr.mxu0 0.0
        %248 = vmatpush1.msra.mxu0 0.0
        %249 = vmatprep.subr.mxu0 0.0
        %250 = vmatpush1.msra.mxu0 0.0
        %251 = vmatprep.subr.mxu0 0.0
        %252 = vmatpush1.msra.mxu0 %v214
        %253 = vmatprep.subr.mxu0 0.0
        %254 = vmatpush1.msra.mxu0 %v213
        %255 = vmatprep.subr.mxu0 0.0
        %256 = vmatpush2.msra.mxu0 0.0
        %257 = vmatprep.subr.mxu0 0.0
        %258 = vmatpush2.msra.mxu0 0.0
        %259 = vmatprep.subr.mxu0 0.0
        %260 = vmatpush2.msra.mxu0 0.0
        %261 = vmatprep.subr.mxu0 0.0
        %262 = vmatpush2.msra.mxu0 0.0
        %263 = vmatprep.subr.mxu0 0.0
        %264 = vmatpush2.msra.mxu0 0.0
        %265 = vmatprep.subr.mxu0 0.0
        %266 = vmatpush2.msra.mxu0 0.0
        %267 = vmatprep.subr.mxu0 0.0
        %268 = vmatpush2.msra.mxu0 0.0
        %269 = vmatprep.subr.mxu0 0.0
        %270 = vmatpush2.msra.mxu0 0.0
        %271 = vmatprep.subr.mxu0 0.0
        %272 = vmatpush2.msra.mxu0 0.0
        %273 = vmatprep.subr.mxu0 0.0
        %274 = vmatpush2.msra.mxu0 0.0
        %275 = vmatprep.subr.mxu0 0.0
        %276 = vmatpush2.msra.mxu0 0.0
        %277 = vmatprep.subr.mxu0 0.0
        %278 = vmatpush2.msra.mxu0 0.0
        %279 = vmatprep.subr.mxu0 0.0
        %280 = vmatpush2.msra.mxu0 0.0
        %281 = vmatprep.subr.mxu0 0.0
        %282 = vmatpush2.msra.mxu0 0.0
        %283 = vmatprep.subr.mxu0 0.0
        %284 = vmatpush2.msra.mxu0 0.0
        %285 = vmatprep.subr.mxu0 0.0
        %286 = vmatpush2.msra.mxu0 0.0
        %287 = vmatprep.mubr.f32.mxu0 0.0
        %288 = vmatmul.mubr.f32.gmra.mxu0 %v221
        %v289 = vpop.f32.mrf.mxu0
        %v290 = vadd.f32 %v218, %v289
        %v291 = vpop.f32.mrf.mxu0
        %292 = vdwg.mxu0
        %vm293 = vcmp.gt.f32.partialorder %v290, 0.0
        %v294 = vmul.f32 %v290, 0.01
        %v295 = vsel %vm293, %v290, %v294
        %v296 = vld [vmem:[#allocation2] sm:$0xff]
        %v297 = vld [vmem:[#allocation2 + $0x8] sm:$0xff]
        %v298 = vld [vmem:[#allocation2 + $0x10] sm:$0xff]
        %v299 = vld [vmem:[#allocation2 + $0x18] sm:$0xff]
        %v300 = vld [vmem:[#allocation2 + $0x20] sm:$0xff]
        %v301 = vld [vmem:[#allocation2 + $0x28] sm:$0xff]
        %v302 = vld [vmem:[#allocation2 + $0x30] sm:$0xff]
        %v303 = vld [vmem:[#allocation2 + $0x38] sm:$0xff]
        %v304 = vld [vmem:[#allocation2 + $0x40] sm:$0xff]
        %v305 = vld [vmem:[#allocation2 + $0x48] sm:$0xff]
        %v306 = vld [vmem:[#allocation2 + $0x50] sm:$0xff]
        %v307 = vld [vmem:[#allocation2 + $0x58] sm:$0xff]
        %v308 = vld [vmem:[#allocation2 + $0x60] sm:$0xff]
        %v309 = vld [vmem:[#allocation2 + $0x68] sm:$0xff]
        %v310 = vld [vmem:[#allocation2 + $0x70] sm:$0xff]
        %v311 = vld [vmem:[#allocation2 + $0x78] sm:$0xff]
        %v312 = vlaneseq
        %v313 = vshrl.u32 %v312, 7
        %v314 = vsub.s32 0, %v313
        %v315 = vrot.slane %v210, %v314
        %316 = vmatprep.subr.mxu0 0.0
        %317 = vmatpush1.msra.mxu0 %v311
        %318 = vmatprep.subr.mxu0 0.0
        %319 = vmatpush1.msra.mxu0 %v310
        %320 = vmatprep.subr.mxu0 0.0
        %321 = vmatpush1.msra.mxu0 %v309
        %322 = vmatprep.subr.mxu0 0.0
        %323 = vmatpush1.msra.mxu0 %v308
        %324 = vmatprep.subr.mxu0 0.0
        %325 = vmatpush1.msra.mxu0 %v307
        %326 = vmatprep.subr.mxu0 0.0
        %327 = vmatpush1.msra.mxu0 %v306
        %328 = vmatprep.subr.mxu0 0.0
        %329 = vmatpush1.msra.mxu0 %v305
        %330 = vmatprep.subr.mxu0 0.0
        %331 = vmatpush1.msra.mxu0 %v304
        %332 = vmatprep.subr.mxu0 0.0
        %333 = vmatpush1.msra.mxu0 %v303
        %334 = vmatprep.subr.mxu0 0.0
        %335 = vmatpush1.msra.mxu0 %v302
        %336 = vmatprep.subr.mxu0 0.0
        %337 = vmatpush1.msra.mxu0 %v301
        %338 = vmatprep.subr.mxu0 0.0
        %339 = vmatpush1.msra.mxu0 %v300
        %340 = vmatprep.subr.mxu0 0.0
        %341 = vmatpush1.msra.mxu0 %v299
        %342 = vmatprep.subr.mxu0 0.0
        %343 = vmatpush1.msra.mxu0 %v298
        %344 = vmatprep.subr.mxu0 0.0
        %345 = vmatpush1.msra.mxu0 %v297
        %346 = vmatprep.subr.mxu0 0.0
        %347 = vmatpush1.msra.mxu0 %v296
        %348 = vmatprep.subr.mxu0 0.0
        %349 = vmatpush2.msra.mxu0 0.0
        %350 = vmatprep.subr.mxu0 0.0
        %351 = vmatpush2.msra.mxu0 0.0
        %352 = vmatprep.subr.mxu0 0.0
        %353 = vmatpush2.msra.mxu0 0.0
        %354 = vmatprep.subr.mxu0 0.0
        %355 = vmatpush2.msra.mxu0 0.0
        %356 = vmatprep.subr.mxu0 0.0
        %357 = vmatpush2.msra.mxu0 0.0
        %358 = vmatprep.subr.mxu0 0.0
        %359 = vmatpush2.msra.mxu0 0.0
        %360 = vmatprep.subr.mxu0 0.0
        %361 = vmatpush2.msra.mxu0 0.0
        %362 = vmatprep.subr.mxu0 0.0
        %363 = vmatpush2.msra.mxu0 0.0
        %364 = vmatprep.subr.mxu0 0.0
        %365 = vmatpush2.msra.mxu0 0.0
        %366 = vmatprep.subr.mxu0 0.0
        %367 = vmatpush2.msra.mxu0 0.0
        %368 = vmatprep.subr.mxu0 0.0
        %369 = vmatpush2.msra.mxu0 0.0
        %370 = vmatprep.subr.mxu0 0.0
        %371 = vmatpush2.msra.mxu0 0.0
        %372 = vmatprep.subr.mxu0 0.0
        %373 = vmatpush2.msra.mxu0 0.0
        %374 = vmatprep.subr.mxu0 0.0
        %375 = vmatpush2.msra.mxu0 0.0
        %376 = vmatprep.subr.mxu0 0.0
        %377 = vmatpush2.msra.mxu0 0.0
        %378 = vmatprep.subr.mxu0 0.0
        %379 = vmatpush2.msra.mxu0 0.0
        %380 = vmatprep.mubr.f32.mxu0 0.0
        %381 = vmatmul.mubr.f32.gmra.mxu0 %v295
        %v382 = vpop.f32.mrf.mxu0
        %v383 = vadd.f32 %v315, %v382
        %v384 = vpop.f32.mrf.mxu0
        %385 = vdwg.mxu0
        %vm386 = vcmp.gt.f32.partialorder %v383, 0.0
        %v387 = vmul.f32 %v383, 0.01
        %v388 = vsel %vm386, %v383, %v387
        %s389 = scalar_lea.vmem [#allocation2], 128
        %v390 = vld [vmem:[%s389] sm:$0xff]
        %v391 = vld [vmem:[%s389 + $0x8] sm:$0xff]
        %v392 = vld [vmem:[%s389 + $0x10] sm:$0xff]
        %v393 = vld [vmem:[%s389 + $0x18] sm:$0xff]
        %v394 = vld [vmem:[%s389 + $0x20] sm:$0xff]
        %v395 = vld [vmem:[%s389 + $0x28] sm:$0xff]
        %v396 = vld [vmem:[%s389 + $0x30] sm:$0xff]
        %v397 = vld [vmem:[%s389 + $0x38] sm:$0xff]
        %v398 = vld [vmem:[%s389 + $0x40] sm:$0xff]
        %v399 = vld [vmem:[%s389 + $0x48] sm:$0xff]
        %v400 = vld [vmem:[%s389 + $0x50] sm:$0xff]
        %v401 = vld [vmem:[%s389 + $0x58] sm:$0xff]
        %v402 = vld [vmem:[%s389 + $0x60] sm:$0xff]
        %v403 = vld [vmem:[%s389 + $0x68] sm:$0xff]
        %v404 = vld [vmem:[%s389 + $0x70] sm:$0xff]
        %v405 = vld [vmem:[%s389 + $0x78] sm:$0xff]
        %v406 = vlaneseq
        %v407 = vshrl.u32 %v406, 7
        %v408 = vsub.s32 0, %v407
        %v409 = vrot.slane %v211, %v408
        %410 = vmatprep.subr.mxu0 0.0
        %411 = vmatpush1.msra.mxu0 %v405
        %412 = vmatprep.subr.mxu0 0.0
        %413 = vmatpush1.msra.mxu0 %v404
        %414 = vmatprep.subr.mxu0 0.0
        %415 = vmatpush1.msra.mxu0 %v403
        %416 = vmatprep.subr.mxu0 0.0
        %417 = vmatpush1.msra.mxu0 %v402
        %418 = vmatprep.subr.mxu0 0.0
        %419 = vmatpush1.msra.mxu0 %v401
        %420 = vmatprep.subr.mxu0 0.0
        %421 = vmatpush1.msra.mxu0 %v400
        %422 = vmatprep.subr.mxu0 0.0
        %423 = vmatpush1.msra.mxu0 %v399
        %424 = vmatprep.subr.mxu0 0.0
        %425 = vmatpush1.msra.mxu0 %v398
        %426 = vmatprep.subr.mxu0 0.0
        %427 = vmatpush1.msra.mxu0 %v397
        %428 = vmatprep.subr.mxu0 0.0
        %429 = vmatpush1.msra.mxu0 %v396
        %430 = vmatprep.subr.mxu0 0.0
        %431 = vmatpush1.msra.mxu0 %v395
        %432 = vmatprep.subr.mxu0 0.0
        %433 = vmatpush1.msra.mxu0 %v394
        %434 = vmatprep.subr.mxu0 0.0
        %435 = vmatpush1.msra.mxu0 %v393
        %436 = vmatprep.subr.mxu0 0.0
        %437 = vmatpush1.msra.mxu0 %v392
        %438 = vmatprep.subr.mxu0 0.0
        %439 = vmatpush1.msra.mxu0 %v391
        %440 = vmatprep.subr.mxu0 0.0
        %441 = vmatpush1.msra.mxu0 %v390
        %442 = vmatprep.subr.mxu0 0.0
        %443 = vmatpush2.msra.mxu0 0.0
        %444 = vmatprep.subr.mxu0 0.0
        %445 = vmatpush2.msra.mxu0 0.0
        %446 = vmatprep.subr.mxu0 0.0
        %447 = vmatpush2.msra.mxu0 0.0
        %448 = vmatprep.subr.mxu0 0.0
        %449 = vmatpush2.msra.mxu0 0.0
        %450 = vmatprep.subr.mxu0 0.0
        %451 = vmatpush2.msra.mxu0 0.0
        %452 = vmatprep.subr.mxu0 0.0
        %453 = vmatpush2.msra.mxu0 0.0
        %454 = vmatprep.subr.mxu0 0.0
        %455 = vmatpush2.msra.mxu0 0.0
        %456 = vmatprep.subr.mxu0 0.0
        %457 = vmatpush2.msra.mxu0 0.0
        %458 = vmatprep.subr.mxu0 0.0
        %459 = vmatpush2.msra.mxu0 0.0
        %460 = vmatprep.subr.mxu0 0.0
        %461 = vmatpush2.msra.mxu0 0.0
        %462 = vmatprep.subr.mxu0 0.0
        %463 = vmatpush2.msra.mxu0 0.0
        %464 = vmatprep.subr.mxu0 0.0
        %465 = vmatpush2.msra.mxu0 0.0
        %466 = vmatprep.subr.mxu0 0.0
        %467 = vmatpush2.msra.mxu0 0.0
        %468 = vmatprep.subr.mxu0 0.0
        %469 = vmatpush2.msra.mxu0 0.0
        %470 = vmatprep.subr.mxu0 0.0
        %471 = vmatpush2.msra.mxu0 0.0
        %472 = vmatprep.subr.mxu0 0.0
        %473 = vmatpush2.msra.mxu0 0.0
        %474 = vmatprep.mubr.f32.mxu0 0.0
        %475 = vmatmul.mubr.f32.gmra.mxu0 %v388
        %v476 = vpop.f32.mrf.mxu0
        %v477 = vadd.f32 %v409, %v476
        %v478 = vpop.f32.mrf.mxu0
        %479 = vdwg.mxu0
        %vm480 = vcmp.gt.f32.partialorder %v477, 0.0
        %v481 = vmul.f32 %v477, 0.01
        %v482 = vsel %vm480, %v477, %v481
        %v483 = vlaneseq
        %v484 = vshrl.u32 %v483, 7
        %v485 = vsub.s32 0, %v484
        %v486 = vrot.slane %v212, %v485
        %v487 = vmul.f32 %v482, %v486
        %488 = vadd.xlane.f32.xlu0 %v487
        %v489 = vpop.xlane.xlu0 %488
        %v490 = vadd.f32 %v489, %v486
        %v491 = vlaneseq
        %v492 = vand.u32 %v491, 127
        %vm493 = vcmp.lt.s32.totalorder %v492, 32
        %vm494 = vcmp.eq.s32.totalorder %v492, 32
        %496 = vset.pattern.permute.xlu0 64
        %497 = vperm.xlu0 %496, %v490
        %v498 = vpop.permute.xlu0 %497
        %v500 = vsel %vm494, %v498, 0.0
        %v501 = vsel %vm493, %v482, %v500
        %502 = vst [vmem:[%s203] sm:$0xff] %v501
        %s503 = sand.u32 %s116, 1
        %s504 = scalar_lea.sflag [#allocation4], %s503
        %s505 = sand.u32 %s116, 1
        %s506 = smul.addr %s505, 8
        %s507 = scalar_lea.vmem [#allocation5], %s506
        // Predicated region
        $region41: #{tpu_custom_call.1} parent=35 // pred_check
          %p508 = pneg %p126
        $region42: #{tpu_custom_call.1} parent=35 // pred_check_branch
          %510 = sbr.rel (%p508) target = $region44
        $region43: #{tpu_custom_call.1} parent=35 // pred_region
          %s512 = ssub.s32 128, 128
          %513 = vsyncadd %s504, %s512
          %s514 = smul.addr %s19, 128
          %s515 = scalar_lea.hbm %s4, %s514
          %s517 = sshll.u32 %s507, 4
          %s518 = int_to_ptr.vmem [resolvable:$true] %s517
          %520 = dma.vmem_to_hbm [thread:$0]  %s518, 128, %s515, %s504
        $region44: #{tpu_custom_call.1} parent=35 // pred_fallthru
          _
      $region36: #{tpu_custom_call.1} parent=5 // pred_fallthru
        _
      %p521 = scmp.le.s32.totalorder 2, %s14
      // Predicated region
      $region45: #{tpu_custom_call.1} parent=5 // pred_check
        %p522 = pneg %p521
      $region46: #{tpu_custom_call.1} parent=5 // pred_check_branch
        %524 = sbr.rel (%p522) target = $region48
      $region47: #{tpu_custom_call.1} parent=5 // pred_region
        %s525 = ssub.s32 %s14, 2
        // Predicated region
        $region49: #{tpu_custom_call.1} parent=47 // pred_check
          %p526 = pneg %p132
        $region50: #{tpu_custom_call.1} parent=47 // pred_check_branch
          %528 = sbr.rel (%p526) target = $region52
        $region51: #{tpu_custom_call.1} parent=47 // pred_region
          %s529 = sand.u32 %s117, 1
          %s530 = scalar_lea.sflag [#allocation4], %s529
          %s531 = sand.u32 %s117, 1
          %s532 = smul.addr %s531, 8
          %s533 = scalar_lea.vmem [#allocation5], %s532
          %534 = dma.done %s530, 128
        $region52: #{tpu_custom_call.1} parent=47 // pred_fallthru
          _
      $region48: #{tpu_custom_call.1} parent=5 // pred_fallthru
        _
    $region6: #{tpu_custom_call.1} parent=1 // loop_footer
      %s18 = sadd.s32 1, %s14
    $region7: #{tpu_custom_call.1} parent=1 // loop_footer_branch
      %13 = sbr.rel target = $region3
    $region8: #{tpu_custom_call.1} parent=1 // loop_exit
      _
    %535 = vsyncpa [#allocation3], 1
    %s536 = scalar_lea.sflag [#allocation3], 1
    %537 = vsyncpa %s536, 1
    %538 = vsyncpa [#allocation4], 1
    %s539 = scalar_lea.sflag [#allocation4], 1
    %540 = vsyncpa %s539, 1

</llo_original>
